<compile_context>
chip_gen: v7x
topology: tpu7x:2x2x1
jax: 0.10.0
libtpu: 0.0.40
codegen_flags: <defaults>
</compile_context>

<pallas_src>
import jax
import jax.numpy as jnp
from jax import lax
from jax.experimental import pallas as pl
from jax.experimental.pallas import tpu as pltpu

VPAD = 32  # vocab (26) padded up to a lane-friendly 32; padded rows are never selected.


def _fused_kernel(ids_ref, t_ref, w2t_ref, b_ref, o_ref):
    # ids: (B, S) int32
    # t:   (S, VPAD, H) f32   folded tables  T[s] = emb @ W1_s^T  (zero-padded rows 26..31)
    # w2t: (H, H) f32         fc2 weight, pre-transposed to (in, out)
    # b:   (2, H) f32         row 0 = b1, row 1 = b2
    # o:   (B, H) f32
    ids = ids_ref[...]
    B, S = ids.shape
    H = o_ref.shape[1]

    tok_iota = lax.broadcasted_iota(jnp.int32, (B, VPAD), 1)        # (B, VPAD)

    # First layer with the embedding folded in: sum over sequence positions of
    # one_hot(ids[:, s]) @ T[s].  Static unroll (S is small and fixed).
    acc = jnp.zeros((B, H), dtype=jnp.float32)
    for s in range(S):
        onehot = (ids[:, s:s + 1] == tok_iota).astype(jnp.float32)  # (B, VPAD)
        acc = acc + jnp.dot(onehot, t_ref[s], preferred_element_type=jnp.float32)
    h = jnp.maximum(acc + b_ref[0:1, :], 0.0)                       # relu(fc1(x))

    o = jnp.dot(h, w2t_ref[...], preferred_element_type=jnp.float32) + b_ref[1:2, :]
    o_ref[...] = jnp.maximum(o, 0.0)                                # relu(fc2(h))


def prepare_params(emb, w1, b1, w2, b2):
    """One-time parameter layout (NOT part of the per-call path).

    emb: (26, 16) f32 embedding table
    w1:  (H, S*16) f32, b1: (H,)   (PyTorch nn.Linear layout)
    w2:  (H, H) f32,    b2: (H,)
    Returns (t, w2t, biases) ready for the kernel.
    """
    V, E = emb.shape
    H, F = w1.shape
    S = F // E
    # T[s, v, h] = sum_e emb[v, e] * W1[h, s*E + e]   -> (S, V, H), padded to (S, VPAD, H)
    t = jnp.einsum("ve,hse->svh", emb, w1.reshape(H, S, E))
    t = jnp.pad(t, ((0, 0), (0, VPAD - V), (0, 0))).astype(jnp.float32)
    biases = jnp.stack([b1, b2], axis=0).astype(jnp.float32)        # (2, H)
    return t, w2.T.astype(jnp.float32), biases


def modular_branch_forward(ids, t, w2t, biases):
    """Forward pass. ids: (B, S) int32 in [0, 26). Returns (B, H) f32."""
    B, _ = ids.shape
    H = w2t.shape[1]
    vmem = pl.BlockSpec(memory_space=pltpu.MemorySpace.VMEM)
    return pl.pallas_call(
        _fused_kernel,
        out_shape=jax.ShapeDtypeStruct((B, H), jnp.float32),
        in_specs=[vmem, vmem, vmem, vmem],
        out_specs=vmem,
    )(ids, t, w2t, biases)


def _reference_forward(ids, emb, w1, b1, w2, b2):
    B, S = ids.shape
    x = jnp.take(emb, ids, axis=0).reshape(B, -1)
    h = jnp.maximum(x @ w1.T + b1, 0.0)
    return jnp.maximum(h @ w2.T + b2, 0.0)


if __name__ == "__main__":
    B, S, H, V, E = 2, 8, 32, 26, 16   # batch, seq_len, hidden_dim, vocab, embed_dim

    key = jax.random.PRNGKey(0)
    k_ids, k_emb, k_w1, k_b1, k_w2, k_b2 = jax.random.split(key, 6)

    ids = jax.random.randint(k_ids, (B, S), 0, V, dtype=jnp.int32)
    emb = jax.random.normal(k_emb, (V, E), dtype=jnp.float32)

    # Deterministic, PyTorch-Linear-like uniform(-1/sqrt(fan_in), 1/sqrt(fan_in)) init.
    fan1 = S * E
    w1 = jax.random.uniform(k_w1, (H, fan1), jnp.float32, -1.0, 1.0) / jnp.sqrt(fan1)
    b1 = jax.random.uniform(k_b1, (H,), jnp.float32, -1.0, 1.0) / jnp.sqrt(fan1)
    w2 = jax.random.uniform(k_w2, (H, H), jnp.float32, -1.0, 1.0) / jnp.sqrt(H)
    b2 = jax.random.uniform(k_b2, (H,), jnp.float32, -1.0, 1.0) / jnp.sqrt(H)

    # One-time param prep (cached in a real model), then the lean forward call.
    t, w2t, biases = prepare_params(emb, w1, b1, w2, b2)
    out = modular_branch_forward(ids, t, w2t, biases)
    jax.block_until_ready(out)

    ref = _reference_forward(ids, emb, w1, b1, w2, b2)
    assert out.shape == (B, H)
    assert jnp.allclose(out, ref, atol=1e-4, rtol=1e-4), "mismatch vs JAX reference"

    print("KERNEL_OK")
</pallas_src>

<mosaic_0001>
module attributes {stable_mosaic.version = 11 : i64} {
  func.func @_fused_kernel(%arg0: memref<2x8xi32, #tpu.memory_space<vmem>>, %arg1: memref<8x32x32xf32, #tpu.memory_space<vmem>>, %arg2: memref<32x32xf32, #tpu.memory_space<vmem>>, %arg3: memref<2x32xf32, #tpu.memory_space<vmem>>, %arg4: memref<2x32xf32, #tpu.memory_space<vmem>>) attributes {dimension_semantics = [], scalar_prefetch = 0 : i64, scratch_operands = 0 : i64, tpu.core_type = #tpu.core_type<tc>} {
    %c0 = arith.constant 0 : index
    %c0_0 = arith.constant 0 : index
    %0 = vector.load %arg0[%c0, %c0_0] : memref<2x8xi32, #tpu.memory_space<vmem>>, vector<2x8xi32>
    %1 = tpu.iota {dimensions = array<i32: 1>} : vector<2x32xi32>
    %cst = arith.constant 0.000000e+00 : f32
    %2 = vector.broadcast %cst : f32 to vector<2x32xf32>
    %3 = vector.extract_strided_slice %0 {offsets = [0, 0], sizes = [2, 1], strides = [1, 1]} : vector<2x8xi32> to vector<2x1xi32>
    %4 = vector.broadcast %3 : vector<2x1xi32> to vector<2x32xi32>
    %5 = arith.cmpi eq, %4, %1 : vector<2x32xi32>
    %6 = arith.extui %5 : vector<2x32xi1> to vector<2x32xi32>
    %7 = arith.sitofp %6 : vector<2x32xi32> to vector<2x32xf32>
    %c0_1 = arith.constant 0 : index
    %c0_2 = arith.constant 0 : index
    %c0_3 = arith.constant 0 : index
    %8 = vector.load %arg1[%c0_1, %c0_2, %c0_3] : memref<8x32x32xf32, #tpu.memory_space<vmem>>, vector<1x32x32xf32>
    %9 = vector.shape_cast %8 : vector<1x32x32xf32> to vector<32x32xf32>
    %cst_4 = arith.constant dense<0.000000e+00> : vector<2x32xf32>
    %10 = tpu.matmul %7, %9, %cst_4 {dimension_numbers = #tpu.dot_dimension_numbers<[1], [0], [0], [1], [0, 0, 1, 1], [], []>} : vector<2x32xf32>, vector<32x32xf32>, vector<2x32xf32> -> vector<2x32xf32>
    %11 = arith.addf %2, %10 : vector<2x32xf32>
    %12 = vector.extract_strided_slice %0 {offsets = [0, 1], sizes = [2, 1], strides = [1, 1]} : vector<2x8xi32> to vector<2x1xi32>
    %13 = vector.broadcast %12 : vector<2x1xi32> to vector<2x32xi32>
    %14 = arith.cmpi eq, %13, %1 : vector<2x32xi32>
    %15 = arith.extui %14 : vector<2x32xi1> to vector<2x32xi32>
    %16 = arith.sitofp %15 : vector<2x32xi32> to vector<2x32xf32>
    %c1 = arith.constant 1 : index
    %c0_5 = arith.constant 0 : index
    %c0_6 = arith.constant 0 : index
    %17 = vector.load %arg1[%c1, %c0_5, %c0_6] : memref<8x32x32xf32, #tpu.memory_space<vmem>>, vector<1x32x32xf32>
    %18 = vector.shape_cast %17 : vector<1x32x32xf32> to vector<32x32xf32>
    %cst_7 = arith.constant dense<0.000000e+00> : vector<2x32xf32>
    %19 = tpu.matmul %16, %18, %cst_7 {dimension_numbers = #tpu.dot_dimension_numbers<[1], [0], [0], [1], [0, 0, 1, 1], [], []>} : vector<2x32xf32>, vector<32x32xf32>, vector<2x32xf32> -> vector<2x32xf32>
    %20 = arith.addf %11, %19 : vector<2x32xf32>
    %21 = vector.extract_strided_slice %0 {offsets = [0, 2], sizes = [2, 1], strides = [1, 1]} : vector<2x8xi32> to vector<2x1xi32>
    %22 = vector.broadcast %21 : vector<2x1xi32> to vector<2x32xi32>
    %23 = arith.cmpi eq, %22, %1 : vector<2x32xi32>
    %24 = arith.extui %23 : vector<2x32xi1> to vector<2x32xi32>
    %25 = arith.sitofp %24 : vector<2x32xi32> to vector<2x32xf32>
    %c2 = arith.constant 2 : index
    %c0_8 = arith.constant 0 : index
    %c0_9 = arith.constant 0 : index
    %26 = vector.load %arg1[%c2, %c0_8, %c0_9] : memref<8x32x32xf32, #tpu.memory_space<vmem>>, vector<1x32x32xf32>
    %27 = vector.shape_cast %26 : vector<1x32x32xf32> to vector<32x32xf32>
    %cst_10 = arith.constant dense<0.000000e+00> : vector<2x32xf32>
    %28 = tpu.matmul %25, %27, %cst_10 {dimension_numbers = #tpu.dot_dimension_numbers<[1], [0], [0], [1], [0, 0, 1, 1], [], []>} : vector<2x32xf32>, vector<32x32xf32>, vector<2x32xf32> -> vector<2x32xf32>
    %29 = arith.addf %20, %28 : vector<2x32xf32>
    %30 = vector.extract_strided_slice %0 {offsets = [0, 3], sizes = [2, 1], strides = [1, 1]} : vector<2x8xi32> to vector<2x1xi32>
    %31 = vector.broadcast %30 : vector<2x1xi32> to vector<2x32xi32>
    %32 = arith.cmpi eq, %31, %1 : vector<2x32xi32>
    %33 = arith.extui %32 : vector<2x32xi1> to vector<2x32xi32>
    %34 = arith.sitofp %33 : vector<2x32xi32> to vector<2x32xf32>
    %c3 = arith.constant 3 : index
    %c0_11 = arith.constant 0 : index
    %c0_12 = arith.constant 0 : index
    %35 = vector.load %arg1[%c3, %c0_11, %c0_12] : memref<8x32x32xf32, #tpu.memory_space<vmem>>, vector<1x32x32xf32>
    %36 = vector.shape_cast %35 : vector<1x32x32xf32> to vector<32x32xf32>
    %cst_13 = arith.constant dense<0.000000e+00> : vector<2x32xf32>
    %37 = tpu.matmul %34, %36, %cst_13 {dimension_numbers = #tpu.dot_dimension_numbers<[1], [0], [0], [1], [0, 0, 1, 1], [], []>} : vector<2x32xf32>, vector<32x32xf32>, vector<2x32xf32> -> vector<2x32xf32>
    %38 = arith.addf %29, %37 : vector<2x32xf32>
    %39 = vector.extract_strided_slice %0 {offsets = [0, 4], sizes = [2, 1], strides = [1, 1]} : vector<2x8xi32> to vector<2x1xi32>
    %40 = vector.broadcast %39 : vector<2x1xi32> to vector<2x32xi32>
    %41 = arith.cmpi eq, %40, %1 : vector<2x32xi32>
    %42 = arith.extui %41 : vector<2x32xi1> to vector<2x32xi32>
    %43 = arith.sitofp %42 : vector<2x32xi32> to vector<2x32xf32>
    %c4 = arith.constant 4 : index
    %c0_14 = arith.constant 0 : index
    %c0_15 = arith.constant 0 : index
    %44 = vector.load %arg1[%c4, %c0_14, %c0_15] : memref<8x32x32xf32, #tpu.memory_space<vmem>>, vector<1x32x32xf32>
    %45 = vector.shape_cast %44 : vector<1x32x32xf32> to vector<32x32xf32>
    %cst_16 = arith.constant dense<0.000000e+00> : vector<2x32xf32>
    %46 = tpu.matmul %43, %45, %cst_16 {dimension_numbers = #tpu.dot_dimension_numbers<[1], [0], [0], [1], [0, 0, 1, 1], [], []>} : vector<2x32xf32>, vector<32x32xf32>, vector<2x32xf32> -> vector<2x32xf32>
    %47 = arith.addf %38, %46 : vector<2x32xf32>
    %48 = vector.extract_strided_slice %0 {offsets = [0, 5], sizes = [2, 1], strides = [1, 1]} : vector<2x8xi32> to vector<2x1xi32>
    %49 = vector.broadcast %48 : vector<2x1xi32> to vector<2x32xi32>
    %50 = arith.cmpi eq, %49, %1 : vector<2x32xi32>
    %51 = arith.extui %50 : vector<2x32xi1> to vector<2x32xi32>
    %52 = arith.sitofp %51 : vector<2x32xi32> to vector<2x32xf32>
    %c5 = arith.constant 5 : index
    %c0_17 = arith.constant 0 : index
    %c0_18 = arith.constant 0 : index
    %53 = vector.load %arg1[%c5, %c0_17, %c0_18] : memref<8x32x32xf32, #tpu.memory_space<vmem>>, vector<1x32x32xf32>
    %54 = vector.shape_cast %53 : vector<1x32x32xf32> to vector<32x32xf32>
    %cst_19 = arith.constant dense<0.000000e+00> : vector<2x32xf32>
    %55 = tpu.matmul %52, %54, %cst_19 {dimension_numbers = #tpu.dot_dimension_numbers<[1], [0], [0], [1], [0, 0, 1, 1], [], []>} : vector<2x32xf32>, vector<32x32xf32>, vector<2x32xf32> -> vector<2x32xf32>
    %56 = arith.addf %47, %55 : vector<2x32xf32>
    %57 = vector.extract_strided_slice %0 {offsets = [0, 6], sizes = [2, 1], strides = [1, 1]} : vector<2x8xi32> to vector<2x1xi32>
    %58 = vector.broadcast %57 : vector<2x1xi32> to vector<2x32xi32>
    %59 = arith.cmpi eq, %58, %1 : vector<2x32xi32>
    %60 = arith.extui %59 : vector<2x32xi1> to vector<2x32xi32>
    %61 = arith.sitofp %60 : vector<2x32xi32> to vector<2x32xf32>
    %c6 = arith.constant 6 : index
    %c0_20 = arith.constant 0 : index
    %c0_21 = arith.constant 0 : index
    %62 = vector.load %arg1[%c6, %c0_20, %c0_21] : memref<8x32x32xf32, #tpu.memory_space<vmem>>, vector<1x32x32xf32>
    %63 = vector.shape_cast %62 : vector<1x32x32xf32> to vector<32x32xf32>
    %cst_22 = arith.constant dense<0.000000e+00> : vector<2x32xf32>
    %64 = tpu.matmul %61, %63, %cst_22 {dimension_numbers = #tpu.dot_dimension_numbers<[1], [0], [0], [1], [0, 0, 1, 1], [], []>} : vector<2x32xf32>, vector<32x32xf32>, vector<2x32xf32> -> vector<2x32xf32>
    %65 = arith.addf %56, %64 : vector<2x32xf32>
    %66 = vector.extract_strided_slice %0 {offsets = [0, 7], sizes = [2, 1], strides = [1, 1]} : vector<2x8xi32> to vector<2x1xi32>
    %67 = vector.broadcast %66 : vector<2x1xi32> to vector<2x32xi32>
    %68 = arith.cmpi eq, %67, %1 : vector<2x32xi32>
    %69 = arith.extui %68 : vector<2x32xi1> to vector<2x32xi32>
    %70 = arith.sitofp %69 : vector<2x32xi32> to vector<2x32xf32>
    %c7 = arith.constant 7 : index
    %c0_23 = arith.constant 0 : index
    %c0_24 = arith.constant 0 : index
    %71 = vector.load %arg1[%c7, %c0_23, %c0_24] : memref<8x32x32xf32, #tpu.memory_space<vmem>>, vector<1x32x32xf32>
    %72 = vector.shape_cast %71 : vector<1x32x32xf32> to vector<32x32xf32>
    %cst_25 = arith.constant dense<0.000000e+00> : vector<2x32xf32>
    %73 = tpu.matmul %70, %72, %cst_25 {dimension_numbers = #tpu.dot_dimension_numbers<[1], [0], [0], [1], [0, 0, 1, 1], [], []>} : vector<2x32xf32>, vector<32x32xf32>, vector<2x32xf32> -> vector<2x32xf32>
    %74 = arith.addf %65, %73 : vector<2x32xf32>
    %c0_26 = arith.constant 0 : index
    %c0_27 = arith.constant 0 : index
    %75 = vector.load %arg3[%c0_26, %c0_27] : memref<2x32xf32, #tpu.memory_space<vmem>>, vector<1x32xf32>
    %76 = vector.broadcast %75 : vector<1x32xf32> to vector<2x32xf32>
    %77 = arith.addf %74, %76 : vector<2x32xf32>
    %cst_28 = arith.constant 0.000000e+00 : f32
    %78 = vector.broadcast %cst_28 : f32 to vector<2x32xf32>
    %79 = arith.maximumf %77, %78 : vector<2x32xf32>
    %c0_29 = arith.constant 0 : index
    %c0_30 = arith.constant 0 : index
    %80 = vector.load %arg2[%c0_29, %c0_30] : memref<32x32xf32, #tpu.memory_space<vmem>>, vector<32x32xf32>
    %cst_31 = arith.constant dense<0.000000e+00> : vector<2x32xf32>
    %81 = tpu.matmul %79, %80, %cst_31 {dimension_numbers = #tpu.dot_dimension_numbers<[1], [0], [0], [1], [0, 0, 1, 1], [], []>} : vector<2x32xf32>, vector<32x32xf32>, vector<2x32xf32> -> vector<2x32xf32>
    %c1_32 = arith.constant 1 : index
    %c0_33 = arith.constant 0 : index
    %82 = vector.load %arg3[%c1_32, %c0_33] : memref<2x32xf32, #tpu.memory_space<vmem>>, vector<1x32xf32>
    %83 = vector.broadcast %82 : vector<1x32xf32> to vector<2x32xf32>
    %84 = arith.addf %81, %83 : vector<2x32xf32>
    %cst_34 = arith.constant 0.000000e+00 : f32
    %85 = vector.broadcast %cst_34 : f32 to vector<2x32xf32>
    %86 = arith.maximumf %84, %85 : vector<2x32xf32>
    %c0_35 = arith.constant 0 : index
    %c0_36 = arith.constant 0 : index
    %87 = vector.load %arg4[%c0_35, %c0_36] : memref<2x32xf32, #tpu.memory_space<vmem>>, vector<2x32xf32>
    tpu.vector_store %arg4[%c0_35, %c0_36], %86 {strides = array<i32>} : memref<2x32xf32, #tpu.memory_space<vmem>>, vector<2x32xf32>,
    return
  }
}

</mosaic_0001>

<llo_original>
// kernel: tpu_custom_call.1
$region0: #{tpu_custom_call.1}
  #allocation0 [shape = 'u32[]', space=smem, size = 0x4, offset = 0x4, fixed_abs, tag = 'smem constant byte address 0x4 - core index']
  #allocation1 [shape = 'u32[144,128]{1,0:T(1,128)}', space=vmem, size = 0x12000, scoped, tag = 'internal scratch']
  %s0 = inlined_call_operand.hbm [shape: s32[2,8], index: 0, kind: input, shape index: {}]
  %s1 = inlined_call_operand.hbm [shape: f32[8,32,32], index: 1, kind: input, shape index: {}]
  %s2 = inlined_call_operand.hbm [shape: f32[32,32], index: 2, kind: input, shape index: {}]
  %s3 = inlined_call_operand.vmem [shape: f32[2,32], index: 3, kind: input, shape index: {}]
  %s4 = inlined_call_operand.hbm [shape: f32[2,32], index: 4, kind: output, shape index: {}]
  %s5 = sld [smem:[#allocation0]]
  $region38: #{tpu_custom_call.1} parent=0
    _
  %s7 = ssub.s32 1, %s5
  %s8 = scalar_select 0, %s7, %s5
  $region1: #{tpu_custom_call.1} parent=0
    #allocation2 [shape = 'u8[1024]{0}', space=vmem, size = 0x400, scoped, tag = 'input window, operand 0, single buffered']
    #allocation3 [shape = 's32[1]{0}', space=sflag, size = 0x4, scoped, tag = 'scoped memory for tpu_custom_call.1']
    #allocation4 [shape = 's32[1]{0}', space=sflag, size = 0x4, scoped, tag = 'scoped memory for tpu_custom_call.1']
    #allocation5 [shape = 'u8[131072]{0}', space=vmem, size = 0x20000, scoped, tag = 'input window, operand 1, single buffered']
    #allocation6 [shape = 's32[1]{0}', space=sflag, size = 0x4, scoped, tag = 'scoped memory for tpu_custom_call.1']
    #allocation7 [shape = 'u8[16384]{0}', space=vmem, size = 0x4000, scoped, tag = 'input window, operand 2, single buffered']
    #allocation8 [shape = 'u8[1024]{0}', space=vmem, size = 0x400, scoped, tag = 'output window, operand 0, single buffered']
    %9 = vsyncpa [#allocation3], 0
    %10 = vsyncpa [#allocation6], 0
    %11 = vsyncpa [#allocation4], 0
    // Predicated region
    $region2: #{tpu_custom_call.1} parent=1 // pred_check
      _
    $region3: #{tpu_custom_call.1} parent=1 // pred_check_branch
      %13 = sbr.rel (0) target = $region5
    $region4: #{tpu_custom_call.1} parent=1 // pred_region
      %s15 = ssub.s32 32, 32
      %16 = vsyncadd [#allocation3], %s15
      %s18 = sshll.u32 [#allocation2], 4
      %s19 = int_to_ptr.vmem [resolvable:$true] %s18
      %21 = dma.hbm_to_vmem [thread:$0]  %s0, 32, %s19, [#allocation3]
    $region5: #{tpu_custom_call.1} parent=1 // pred_fallthru
      _
    // Predicated region
    $region6: #{tpu_custom_call.1} parent=1 // pred_check
      _
    $region7: #{tpu_custom_call.1} parent=1 // pred_check_branch
      %23 = sbr.rel (0) target = $region9
    $region8: #{tpu_custom_call.1} parent=1 // pred_region
      %s25 = ssub.s32 4096, 4096
      %26 = vsyncadd [#allocation6], %s25
      %s27 = sshll.u32 [#allocation5], 4
      %s28 = int_to_ptr.vmem [resolvable:$true] %s27
      %33 = dma.hbm_to_vmem [thread:$0]  %s1, 4096, %s28, [#allocation6], 128, 128, 8
    $region9: #{tpu_custom_call.1} parent=1 // pred_fallthru
      _
    // Predicated region
    $region10: #{tpu_custom_call.1} parent=1 // pred_check
      _
    $region11: #{tpu_custom_call.1} parent=1 // pred_check_branch
      %35 = sbr.rel (0) target = $region13
    $region12: #{tpu_custom_call.1} parent=1 // pred_region
      %s37 = ssub.s32 512, 512
      %38 = vsyncadd [#allocation6], %s37
      %s39 = sshll.u32 [#allocation7], 4
      %s40 = int_to_ptr.vmem [resolvable:$true] %s39
      %45 = dma.hbm_to_vmem [thread:$0]  %s2, 512, %s40, [#allocation6], 128, 128, 8
    $region13: #{tpu_custom_call.1} parent=1 // pred_fallthru
      _
    // Predicated region
    $region14: #{tpu_custom_call.1} parent=1 // pred_check
      _
    $region15: #{tpu_custom_call.1} parent=1 // pred_check_branch
      %47 = sbr.rel (0) target = $region17
    $region16: #{tpu_custom_call.1} parent=1 // pred_region
      _
    $region17: #{tpu_custom_call.1} parent=1 // pred_fallthru
      _
    // Predicated region
    $region18: #{tpu_custom_call.1} parent=1 // pred_check
      _
    $region19: #{tpu_custom_call.1} parent=1 // pred_check_branch
      %49 = sbr.rel (0) target = $region21
    $region20: #{tpu_custom_call.1} parent=1 // pred_region
      %50 = dma.done [#allocation3], 32
    $region21: #{tpu_custom_call.1} parent=1 // pred_fallthru
      _
    // Predicated region
    $region22: #{tpu_custom_call.1} parent=1 // pred_check
      _
    $region23: #{tpu_custom_call.1} parent=1 // pred_check_branch
      %52 = sbr.rel (0) target = $region25
    $region24: #{tpu_custom_call.1} parent=1 // pred_region
      %53 = dma.done [#allocation6], 4096
    $region25: #{tpu_custom_call.1} parent=1 // pred_fallthru
      _
    // Predicated region
    $region26: #{tpu_custom_call.1} parent=1 // pred_check
      _
    $region27: #{tpu_custom_call.1} parent=1 // pred_check_branch
      %55 = sbr.rel (0) target = $region29
    $region28: #{tpu_custom_call.1} parent=1 // pred_region
      %56 = dma.done [#allocation6], 512
    $region29: #{tpu_custom_call.1} parent=1 // pred_fallthru
      _
    %v57 = vld [vmem:[#allocation2] sm:$0x3]
    %v58 = vlaneseq
    %v59 = vand.u32 %v58, 127
    %60 = vset.pattern.permute.xlu0 0
    %61 = vperm.xlu0 %60, %v57
    %v62 = vpop.permute.xlu0 %61
    %vm63 = vcmp.eq.s32.totalorder %v62, %v59
    %v64 = vsel %vm63, 1, 0
    %v65 = vcvt.s32.f32 %v64
    %v66 = vld [vmem:[#allocation5] sm:$0xff]
    %v67 = vld [vmem:[#allocation5 + $0x8] sm:$0xff]
    %v68 = vld [vmem:[#allocation5 + $0x10] sm:$0xff]
    %v69 = vld [vmem:[#allocation5 + $0x18] sm:$0xff]
    %70 = vset.pattern.permute.xlu0 1
    %71 = vperm.xlu0 %70, %v57
    %v72 = vpop.permute.xlu0 %71
    %vm73 = vcmp.eq.s32.totalorder %v72, %v59
    %v74 = vsel %vm73, 1, 0
    %v75 = vcvt.s32.f32 %v74
    %s76 = scalar_lea.vmem [#allocation5], 32
    %v77 = vld [vmem:[%s76] sm:$0xff]
    %v78 = vld [vmem:[%s76 + $0x8] sm:$0xff]
    %v79 = vld [vmem:[%s76 + $0x10] sm:$0xff]
    %v80 = vld [vmem:[%s76 + $0x18] sm:$0xff]
    %vm81 = vcmask 261120
    %v83 = vsel %vm81, %v75, 0
    %85 = vmatprep.subr.mxu0 0.0
    %86 = vmatpush1.msra.mxu0 %v77
    %87 = vmatprep.subr.mxu0 0.0
    %88 = vmatpush1.msra.mxu0 %v78
    %89 = vmatprep.subr.mxu0 0.0
    %90 = vmatpush1.msra.mxu0 %v79
    %91 = vmatprep.subr.mxu0 0.0
    %92 = vmatpush1.msra.mxu0 %v80
    %93 = vmatprep.subr.mxu0 0.0
    %94 = vmatpush1.msra.mxu0 0.0
    %95 = vmatprep.subr.mxu0 0.0
    %96 = vmatpush1.msra.mxu0 0.0
    %97 = vmatprep.subr.mxu0 0.0
    %98 = vmatpush1.msra.mxu0 0.0
    %99 = vmatprep.subr.mxu0 0.0
    %100 = vmatpush1.msra.mxu0 0.0
    %101 = vmatprep.subr.mxu0 0.0
    %102 = vmatpush1.msra.mxu0 0.0
    %103 = vmatprep.subr.mxu0 0.0
    %104 = vmatpush1.msra.mxu0 0.0
    %105 = vmatprep.subr.mxu0 0.0
    %106 = vmatpush1.msra.mxu0 0.0
    %107 = vmatprep.subr.mxu0 0.0
    %108 = vmatpush1.msra.mxu0 0.0
    %109 = vmatprep.subr.mxu0 0.0
    %110 = vmatpush1.msra.mxu0 0.0
    %111 = vmatprep.subr.mxu0 0.0
    %112 = vmatpush1.msra.mxu0 0.0
    %113 = vmatprep.subr.mxu0 0.0
    %114 = vmatpush1.msra.mxu0 0.0
    %115 = vmatprep.subr.mxu0 0.0
    %116 = vmatpush1.msra.mxu0 0.0
    %117 = vmatprep.subr.mxu0 0.0
    %118 = vmatpush1.msra.mxu0 0.0
    %119 = vmatprep.subr.mxu0 0.0
    %120 = vmatpush1.msra.mxu0 0.0
    %121 = vmatprep.subr.mxu0 0.0
    %122 = vmatpush1.msra.mxu0 0.0
    %123 = vmatprep.subr.mxu0 0.0
    %124 = vmatpush1.msra.mxu0 0.0
    %125 = vmatprep.subr.mxu0 0.0
    %126 = vmatpush1.msra.mxu0 0.0
    %127 = vmatprep.subr.mxu0 0.0
    %128 = vmatpush1.msra.mxu0 0.0
    %129 = vmatprep.subr.mxu0 0.0
    %130 = vmatpush1.msra.mxu0 0.0
    %131 = vmatprep.subr.mxu0 0.0
    %132 = vmatpush1.msra.mxu0 0.0
    %133 = vmatprep.subr.mxu0 0.0
    %134 = vmatpush1.msra.mxu0 0.0
    %135 = vmatprep.subr.mxu0 0.0
    %136 = vmatpush1.msra.mxu0 0.0
    %137 = vmatprep.subr.mxu0 0.0
    %138 = vmatpush1.msra.mxu0 0.0
    %139 = vmatprep.subr.mxu0 0.0
    %140 = vmatpush1.msra.mxu0 0.0
    %141 = vmatprep.subr.mxu0 0.0
    %142 = vmatpush1.msra.mxu0 0.0
    %143 = vmatprep.subr.mxu0 0.0
    %144 = vmatpush1.msra.mxu0 0.0
    %145 = vmatprep.subr.mxu0 0.0
    %146 = vmatpush1.msra.mxu0 0.0
    %147 = vmatprep.subr.mxu0 0.0
    %148 = vmatpush1.msra.mxu0 0.0
    %149 = vmatprep.mubr.f32.mxu0 0.0
    %150 = vmatmul.mubr.f32.gmra.mrb[0].mxu0 %v83
    %v151 = vpop.f32.mrb[0].mxu0
    %v152 = vadd.f32 0.0, %v151
    %v153 = vpop.f32.mrb[0].mxu0
    %154 = vdwg.mxu0
    %v156 = vsel %vm81, %v65, 0
    %158 = vmatprep.subr.mxu0 0.0
    %159 = vmatpush1.msra.mxu0 %v66
    %160 = vmatprep.subr.mxu0 0.0
    %161 = vmatpush1.msra.mxu0 %v67
    %162 = vmatprep.subr.mxu0 0.0
    %163 = vmatpush1.msra.mxu0 %v68
    %164 = vmatprep.subr.mxu0 0.0
    %165 = vmatpush1.msra.mxu0 %v69
    %166 = vmatprep.subr.mxu0 0.0
    %167 = vmatpush1.msra.mxu0 0.0
    %168 = vmatprep.subr.mxu0 0.0
    %169 = vmatpush1.msra.mxu0 0.0
    %170 = vmatprep.subr.mxu0 0.0
    %171 = vmatpush1.msra.mxu0 0.0
    %172 = vmatprep.subr.mxu0 0.0
    %173 = vmatpush1.msra.mxu0 0.0
    %174 = vmatprep.subr.mxu0 0.0
    %175 = vmatpush1.msra.mxu0 0.0
    %176 = vmatprep.subr.mxu0 0.0
    %177 = vmatpush1.msra.mxu0 0.0
    %178 = vmatprep.subr.mxu0 0.0
    %179 = vmatpush1.msra.mxu0 0.0
    %180 = vmatprep.subr.mxu0 0.0
    %181 = vmatpush1.msra.mxu0 0.0
    %182 = vmatprep.subr.mxu0 0.0
    %183 = vmatpush1.msra.mxu0 0.0
    %184 = vmatprep.subr.mxu0 0.0
    %185 = vmatpush1.msra.mxu0 0.0
    %186 = vmatprep.subr.mxu0 0.0
    %187 = vmatpush1.msra.mxu0 0.0
    %188 = vmatprep.subr.mxu0 0.0
    %189 = vmatpush1.msra.mxu0 0.0
    %190 = vmatprep.subr.mxu0 0.0
    %191 = vmatpush1.msra.mxu0 0.0
    %192 = vmatprep.subr.mxu0 0.0
    %193 = vmatpush1.msra.mxu0 0.0
    %194 = vmatprep.subr.mxu0 0.0
    %195 = vmatpush1.msra.mxu0 0.0
    %196 = vmatprep.subr.mxu0 0.0
    %197 = vmatpush1.msra.mxu0 0.0
    %198 = vmatprep.subr.mxu0 0.0
    %199 = vmatpush1.msra.mxu0 0.0
    %200 = vmatprep.subr.mxu0 0.0
    %201 = vmatpush1.msra.mxu0 0.0
    %202 = vmatprep.subr.mxu0 0.0
    %203 = vmatpush1.msra.mxu0 0.0
    %204 = vmatprep.subr.mxu0 0.0
    %205 = vmatpush1.msra.mxu0 0.0
    %206 = vmatprep.subr.mxu0 0.0
    %207 = vmatpush1.msra.mxu0 0.0
    %208 = vmatprep.subr.mxu0 0.0
    %209 = vmatpush1.msra.mxu0 0.0
    %210 = vmatprep.subr.mxu0 0.0
    %211 = vmatpush1.msra.mxu0 0.0
    %212 = vmatprep.subr.mxu0 0.0
    %213 = vmatpush1.msra.mxu0 0.0
    %214 = vmatprep.subr.mxu0 0.0
    %215 = vmatpush1.msra.mxu0 0.0
    %216 = vmatprep.subr.mxu0 0.0
    %217 = vmatpush1.msra.mxu0 0.0
    %218 = vmatprep.subr.mxu0 0.0
    %219 = vmatpush1.msra.mxu0 0.0
    %220 = vmatprep.subr.mxu0 0.0
    %221 = vmatpush1.msra.mxu0 0.0
    %222 = vmatprep.mubr.f32.mxu0 0.0
    %223 = vmatmul.mubr.f32.gmra.mrb[0].mxu0 %v156
    %v224 = vpop.f32.mrb[0].mxu0
    %v225 = vadd.f32 %v152, %v224
    %v226 = vpop.f32.mrb[0].mxu0
    %227 = vdwg.mxu0
    %228 = vset.pattern.permute.xlu0 2
    %229 = vperm.xlu0 %228, %v57
    %v230 = vpop.permute.xlu0 %229
    %vm231 = vcmp.eq.s32.totalorder %v230, %v59
    %v232 = vsel %vm231, 1, 0
    %v233 = vcvt.s32.f32 %v232
    %s234 = scalar_lea.vmem [#allocation5], 64
    %v235 = vld [vmem:[%s234] sm:$0xff]
    %v236 = vld [vmem:[%s234 + $0x8] sm:$0xff]
    %v237 = vld [vmem:[%s234 + $0x10] sm:$0xff]
    %v238 = vld [vmem:[%s234 + $0x18] sm:$0xff]
    %v240 = vsel %vm81, %v233, 0
    %242 = vmatprep.subr.mxu0 0.0
    %243 = vmatpush1.msra.mxu0 %v235
    %244 = vmatprep.subr.mxu0 0.0
    %245 = vmatpush1.msra.mxu0 %v236
    %246 = vmatprep.subr.mxu0 0.0
    %247 = vmatpush1.msra.mxu0 %v237
    %248 = vmatprep.subr.mxu0 0.0
    %249 = vmatpush1.msra.mxu0 %v238
    %250 = vmatprep.subr.mxu0 0.0
    %251 = vmatpush1.msra.mxu0 0.0
    %252 = vmatprep.subr.mxu0 0.0
    %253 = vmatpush1.msra.mxu0 0.0
    %254 = vmatprep.subr.mxu0 0.0
    %255 = vmatpush1.msra.mxu0 0.0
    %256 = vmatprep.subr.mxu0 0.0
    %257 = vmatpush1.msra.mxu0 0.0
    %258 = vmatprep.subr.mxu0 0.0
    %259 = vmatpush1.msra.mxu0 0.0
    %260 = vmatprep.subr.mxu0 0.0
    %261 = vmatpush1.msra.mxu0 0.0
    %262 = vmatprep.subr.mxu0 0.0
    %263 = vmatpush1.msra.mxu0 0.0
    %264 = vmatprep.subr.mxu0 0.0
    %265 = vmatpush1.msra.mxu0 0.0
    %266 = vmatprep.subr.mxu0 0.0
    %267 = vmatpush1.msra.mxu0 0.0
    %268 = vmatprep.subr.mxu0 0.0
    %269 = vmatpush1.msra.mxu0 0.0
    %270 = vmatprep.subr.mxu0 0.0
    %271 = vmatpush1.msra.mxu0 0.0
    %272 = vmatprep.subr.mxu0 0.0
    %273 = vmatpush1.msra.mxu0 0.0
    %274 = vmatprep.subr.mxu0 0.0
    %275 = vmatpush1.msra.mxu0 0.0
    %276 = vmatprep.subr.mxu0 0.0
    %277 = vmatpush1.msra.mxu0 0.0
    %278 = vmatprep.subr.mxu0 0.0
    %279 = vmatpush1.msra.mxu0 0.0
    %280 = vmatprep.subr.mxu0 0.0
    %281 = vmatpush1.msra.mxu0 0.0
    %282 = vmatprep.subr.mxu0 0.0
    %283 = vmatpush1.msra.mxu0 0.0
    %284 = vmatprep.subr.mxu0 0.0
    %285 = vmatpush1.msra.mxu0 0.0
    %286 = vmatprep.subr.mxu0 0.0
    %287 = vmatpush1.msra.mxu0 0.0
    %288 = vmatprep.subr.mxu0 0.0
    %289 = vmatpush1.msra.mxu0 0.0
    %290 = vmatprep.subr.mxu0 0.0
    %291 = vmatpush1.msra.mxu0 0.0
    %292 = vmatprep.subr.mxu0 0.0
    %293 = vmatpush1.msra.mxu0 0.0
    %294 = vmatprep.subr.mxu0 0.0
    %295 = vmatpush1.msra.mxu0 0.0
    %296 = vmatprep.subr.mxu0 0.0
    %297 = vmatpush1.msra.mxu0 0.0
    %298 = vmatprep.subr.mxu0 0.0
    %299 = vmatpush1.msra.mxu0 0.0
    %300 = vmatprep.subr.mxu0 0.0
    %301 = vmatpush1.msra.mxu0 0.0
    %302 = vmatprep.subr.mxu0 0.0
    %303 = vmatpush1.msra.mxu0 0.0
    %304 = vmatprep.subr.mxu0 0.0
    %305 = vmatpush1.msra.mxu0 0.0
    %306 = vmatprep.mubr.f32.mxu0 0.0
    %307 = vmatmul.mubr.f32.gmra.mrb[0].mxu0 %v240
    %v308 = vpop.f32.mrb[0].mxu0
    %v309 = vadd.f32 0.0, %v308
    %v310 = vpop.f32.mrb[0].mxu0
    %311 = vdwg.mxu0
    %v312 = vadd.f32 %v225, %v309
    %313 = vset.pattern.permute.xlu0 3
    %314 = vperm.xlu0 %313, %v57
    %v315 = vpop.permute.xlu0 %314
    %vm316 = vcmp.eq.s32.totalorder %v315, %v59
    %v317 = vsel %vm316, 1, 0
    %v318 = vcvt.s32.f32 %v317
    %s319 = scalar_lea.vmem [#allocation5], 96
    %v320 = vld [vmem:[%s319] sm:$0xff]
    %v321 = vld [vmem:[%s319 + $0x8] sm:$0xff]
    %v322 = vld [vmem:[%s319 + $0x10] sm:$0xff]
    %v323 = vld [vmem:[%s319 + $0x18] sm:$0xff]
    %v325 = vsel %vm81, %v318, 0
    %327 = vmatprep.subr.mxu0 0.0
    %328 = vmatpush1.msra.mxu0 %v320
    %329 = vmatprep.subr.mxu0 0.0
    %330 = vmatpush1.msra.mxu0 %v321
    %331 = vmatprep.subr.mxu0 0.0
    %332 = vmatpush1.msra.mxu0 %v322
    %333 = vmatprep.subr.mxu0 0.0
    %334 = vmatpush1.msra.mxu0 %v323
    %335 = vmatprep.subr.mxu0 0.0
    %336 = vmatpush1.msra.mxu0 0.0
    %337 = vmatprep.subr.mxu0 0.0
    %338 = vmatpush1.msra.mxu0 0.0
    %339 = vmatprep.subr.mxu0 0.0
    %340 = vmatpush1.msra.mxu0 0.0
    %341 = vmatprep.subr.mxu0 0.0
    %342 = vmatpush1.msra.mxu0 0.0
    %343 = vmatprep.subr.mxu0 0.0
    %344 = vmatpush1.msra.mxu0 0.0
    %345 = vmatprep.subr.mxu0 0.0
    %346 = vmatpush1.msra.mxu0 0.0
    %347 = vmatprep.subr.mxu0 0.0
    %348 = vmatpush1.msra.mxu0 0.0
    %349 = vmatprep.subr.mxu0 0.0
    %350 = vmatpush1.msra.mxu0 0.0
    %351 = vmatprep.subr.mxu0 0.0
    %352 = vmatpush1.msra.mxu0 0.0
    %353 = vmatprep.subr.mxu0 0.0
    %354 = vmatpush1.msra.mxu0 0.0
    %355 = vmatprep.subr.mxu0 0.0
    %356 = vmatpush1.msra.mxu0 0.0
    %357 = vmatprep.subr.mxu0 0.0
    %358 = vmatpush1.msra.mxu0 0.0
    %359 = vmatprep.subr.mxu0 0.0
    %360 = vmatpush1.msra.mxu0 0.0
    %361 = vmatprep.subr.mxu0 0.0
    %362 = vmatpush1.msra.mxu0 0.0
    %363 = vmatprep.subr.mxu0 0.0
    %364 = vmatpush1.msra.mxu0 0.0
    %365 = vmatprep.subr.mxu0 0.0
    %366 = vmatpush1.msra.mxu0 0.0
    %367 = vmatprep.subr.mxu0 0.0
    %368 = vmatpush1.msra.mxu0 0.0
    %369 = vmatprep.subr.mxu0 0.0
    %370 = vmatpush1.msra.mxu0 0.0
    %371 = vmatprep.subr.mxu0 0.0
    %372 = vmatpush1.msra.mxu0 0.0
    %373 = vmatprep.subr.mxu0 0.0
    %374 = vmatpush1.msra.mxu0 0.0
    %375 = vmatprep.subr.mxu0 0.0
    %376 = vmatpush1.msra.mxu0 0.0
    %377 = vmatprep.subr.mxu0 0.0
    %378 = vmatpush1.msra.mxu0 0.0
    %379 = vmatprep.subr.mxu0 0.0
    %380 = vmatpush1.msra.mxu0 0.0
    %381 = vmatprep.subr.mxu0 0.0
    %382 = vmatpush1.msra.mxu0 0.0
    %383 = vmatprep.subr.mxu0 0.0
    %384 = vmatpush1.msra.mxu0 0.0
    %385 = vmatprep.subr.mxu0 0.0
    %386 = vmatpush1.msra.mxu0 0.0
    %387 = vmatprep.subr.mxu0 0.0
    %388 = vmatpush1.msra.mxu0 0.0
    %389 = vmatprep.subr.mxu0 0.0
    %390 = vmatpush1.msra.mxu0 0.0
    %391 = vmatprep.mubr.f32.mxu0 0.0
    %392 = vmatmul.mubr.f32.gmra.mrb[0].mxu0 %v325
    %v393 = vpop.f32.mrb[0].mxu0
    %v394 = vadd.f32 0.0, %v393
    %v395 = vpop.f32.mrb[0].mxu0
    %396 = vdwg.mxu0
    %v397 = vadd.f32 %v312, %v394
    %398 = vset.pattern.permute.xlu0 4
    %399 = vperm.xlu0 %398, %v57
    %v400 = vpop.permute.xlu0 %399
    %vm401 = vcmp.eq.s32.totalorder %v400, %v59
    %v402 = vsel %vm401, 1, 0
    %v403 = vcvt.s32.f32 %v402
    %s404 = scalar_lea.vmem [#allocation5], 128
    %v405 = vld [vmem:[%s404] sm:$0xff]
    %v406 = vld [vmem:[%s404 + $0x8] sm:$0xff]
    %v407 = vld [vmem:[%s404 + $0x10] sm:$0xff]
    %v408 = vld [vmem:[%s404 + $0x18] sm:$0xff]
    %v410 = vsel %vm81, %v403, 0
    %412 = vmatprep.subr.mxu0 0.0
    %413 = vmatpush1.msra.mxu0 %v405
    %414 = vmatprep.subr.mxu0 0.0
    %415 = vmatpush1.msra.mxu0 %v406
    %416 = vmatprep.subr.mxu0 0.0
    %417 = vmatpush1.msra.mxu0 %v407
    %418 = vmatprep.subr.mxu0 0.0
    %419 = vmatpush1.msra.mxu0 %v408
    %420 = vmatprep.subr.mxu0 0.0
    %421 = vmatpush1.msra.mxu0 0.0
    %422 = vmatprep.subr.mxu0 0.0
    %423 = vmatpush1.msra.mxu0 0.0
    %424 = vmatprep.subr.mxu0 0.0
    %425 = vmatpush1.msra.mxu0 0.0
    %426 = vmatprep.subr.mxu0 0.0
    %427 = vmatpush1.msra.mxu0 0.0
    %428 = vmatprep.subr.mxu0 0.0
    %429 = vmatpush1.msra.mxu0 0.0
    %430 = vmatprep.subr.mxu0 0.0
    %431 = vmatpush1.msra.mxu0 0.0
    %432 = vmatprep.subr.mxu0 0.0
    %433 = vmatpush1.msra.mxu0 0.0
    %434 = vmatprep.subr.mxu0 0.0
    %435 = vmatpush1.msra.mxu0 0.0
    %436 = vmatprep.subr.mxu0 0.0
    %437 = vmatpush1.msra.mxu0 0.0
    %438 = vmatprep.subr.mxu0 0.0
    %439 = vmatpush1.msra.mxu0 0.0
    %440 = vmatprep.subr.mxu0 0.0
    %441 = vmatpush1.msra.mxu0 0.0
    %442 = vmatprep.subr.mxu0 0.0
    %443 = vmatpush1.msra.mxu0 0.0
    %444 = vmatprep.subr.mxu0 0.0
    %445 = vmatpush1.msra.mxu0 0.0
    %446 = vmatprep.subr.mxu0 0.0
    %447 = vmatpush1.msra.mxu0 0.0
    %448 = vmatprep.subr.mxu0 0.0
    %449 = vmatpush1.msra.mxu0 0.0
    %450 = vmatprep.subr.mxu0 0.0
    %451 = vmatpush1.msra.mxu0 0.0
    %452 = vmatprep.subr.mxu0 0.0
    %453 = vmatpush1.msra.mxu0 0.0
    %454 = vmatprep.subr.mxu0 0.0
    %455 = vmatpush1.msra.mxu0 0.0
    %456 = vmatprep.subr.mxu0 0.0
    %457 = vmatpush1.msra.mxu0 0.0
    %458 = vmatprep.subr.mxu0 0.0
    %459 = vmatpush1.msra.mxu0 0.0
    %460 = vmatprep.subr.mxu0 0.0
    %461 = vmatpush1.msra.mxu0 0.0
    %462 = vmatprep.subr.mxu0 0.0
    %463 = vmatpush1.msra.mxu0 0.0
    %464 = vmatprep.subr.mxu0 0.0
    %465 = vmatpush1.msra.mxu0 0.0
    %466 = vmatprep.subr.mxu0 0.0
    %467 = vmatpush1.msra.mxu0 0.0
    %468 = vmatprep.subr.mxu0 0.0
    %469 = vmatpush1.msra.mxu0 0.0
    %470 = vmatprep.subr.mxu0 0.0
    %471 = vmatpush1.msra.mxu0 0.0
    %472 = vmatprep.subr.mxu0 0.0
    %473 = vmatpush1.msra.mxu0 0.0
    %474 = vmatprep.subr.mxu0 0.0
    %475 = vmatpush1.msra.mxu0 0.0
    %476 = vmatprep.mubr.f32.mxu0 0.0
    %477 = vmatmul.mubr.f32.gmra.mrb[0].mxu0 %v410
    %v478 = vpop.f32.mrb[0].mxu0
    %v479 = vadd.f32 0.0, %v478
    %v480 = vpop.f32.mrb[0].mxu0
    %481 = vdwg.mxu0
    %v482 = vadd.f32 %v397, %v479
    %483 = vset.pattern.permute.xlu0 5
    %484 = vperm.xlu0 %483, %v57
    %v485 = vpop.permute.xlu0 %484
    %vm486 = vcmp.eq.s32.totalorder %v485, %v59
    %v487 = vsel %vm486, 1, 0
    %v488 = vcvt.s32.f32 %v487
    %s489 = scalar_lea.vmem [#allocation5], 160
    %v490 = vld [vmem:[%s489] sm:$0xff]
    %v491 = vld [vmem:[%s489 + $0x8] sm:$0xff]
    %v492 = vld [vmem:[%s489 + $0x10] sm:$0xff]
    %v493 = vld [vmem:[%s489 + $0x18] sm:$0xff]
    %v495 = vsel %vm81, %v488, 0
    %497 = vmatprep.subr.mxu0 0.0
    %498 = vmatpush1.msra.mxu0 %v490
    %499 = vmatprep.subr.mxu0 0.0
    %500 = vmatpush1.msra.mxu0 %v491
    %501 = vmatprep.subr.mxu0 0.0
    %502 = vmatpush1.msra.mxu0 %v492
    %503 = vmatprep.subr.mxu0 0.0
    %504 = vmatpush1.msra.mxu0 %v493
    %505 = vmatprep.subr.mxu0 0.0
    %506 = vmatpush1.msra.mxu0 0.0
    %507 = vmatprep.subr.mxu0 0.0
    %508 = vmatpush1.msra.mxu0 0.0
    %509 = vmatprep.subr.mxu0 0.0
    %510 = vmatpush1.msra.mxu0 0.0
    %511 = vmatprep.subr.mxu0 0.0
    %512 = vmatpush1.msra.mxu0 0.0
    %513 = vmatprep.subr.mxu0 0.0
    %514 = vmatpush1.msra.mxu0 0.0
    %515 = vmatprep.subr.mxu0 0.0
    %516 = vmatpush1.msra.mxu0 0.0
    %517 = vmatprep.subr.mxu0 0.0
    %518 = vmatpush1.msra.mxu0 0.0
    %519 = vmatprep.subr.mxu0 0.0
    %520 = vmatpush1.msra.mxu0 0.0
    %521 = vmatprep.subr.mxu0 0.0
    %522 = vmatpush1.msra.mxu0 0.0
    %523 = vmatprep.subr.mxu0 0.0
    %524 = vmatpush1.msra.mxu0 0.0
    %525 = vmatprep.subr.mxu0 0.0
    %526 = vmatpush1.msra.mxu0 0.0
    %527 = vmatprep.subr.mxu0 0.0
    %528 = vmatpush1.msra.mxu0 0.0
    %529 = vmatprep.subr.mxu0 0.0
    %530 = vmatpush1.msra.mxu0 0.0
    %531 = vmatprep.subr.mxu0 0.0
    %532 = vmatpush1.msra.mxu0 0.0
    %533 = vmatprep.subr.mxu0 0.0
    %534 = vmatpush1.msra.mxu0 0.0
    %535 = vmatprep.subr.mxu0 0.0
    %536 = vmatpush1.msra.mxu0 0.0
    %537 = vmatprep.subr.mxu0 0.0
    %538 = vmatpush1.msra.mxu0 0.0
    %539 = vmatprep.subr.mxu0 0.0
    %540 = vmatpush1.msra.mxu0 0.0
    %541 = vmatprep.subr.mxu0 0.0
    %542 = vmatpush1.msra.mxu0 0.0
    %543 = vmatprep.subr.mxu0 0.0
    %544 = vmatpush1.msra.mxu0 0.0
    %545 = vmatprep.subr.mxu0 0.0
    %546 = vmatpush1.msra.mxu0 0.0
    %547 = vmatprep.subr.mxu0 0.0
    %548 = vmatpush1.msra.mxu0 0.0
    %549 = vmatprep.subr.mxu0 0.0
    %550 = vmatpush1.msra.mxu0 0.0
    %551 = vmatprep.subr.mxu0 0.0
    %552 = vmatpush1.msra.mxu0 0.0
    %553 = vmatprep.subr.mxu0 0.0
    %554 = vmatpush1.msra.mxu0 0.0
    %555 = vmatprep.subr.mxu0 0.0
    %556 = vmatpush1.msra.mxu0 0.0
    %557 = vmatprep.subr.mxu0 0.0
    %558 = vmatpush1.msra.mxu0 0.0
    %559 = vmatprep.subr.mxu0 0.0
    %560 = vmatpush1.msra.mxu0 0.0
    %561 = vmatprep.mubr.f32.mxu0 0.0
    %562 = vmatmul.mubr.f32.gmra.mrb[0].mxu0 %v495
    %v563 = vpop.f32.mrb[0].mxu0
    %v564 = vadd.f32 0.0, %v563
    %v565 = vpop.f32.mrb[0].mxu0
    %566 = vdwg.mxu0
    %v567 = vadd.f32 %v482, %v564
    %568 = vset.pattern.permute.xlu0 6
    %569 = vperm.xlu0 %568, %v57
    %v570 = vpop.permute.xlu0 %569
    %vm571 = vcmp.eq.s32.totalorder %v570, %v59
    %v572 = vsel %vm571, 1, 0
    %v573 = vcvt.s32.f32 %v572
    %s574 = scalar_lea.vmem [#allocation5], 192
    %v575 = vld [vmem:[%s574] sm:$0xff]
    %v576 = vld [vmem:[%s574 + $0x8] sm:$0xff]
    %v577 = vld [vmem:[%s574 + $0x10] sm:$0xff]
    %v578 = vld [vmem:[%s574 + $0x18] sm:$0xff]
    %v580 = vsel %vm81, %v573, 0
    %582 = vmatprep.subr.mxu0 0.0
    %583 = vmatpush1.msra.mxu0 %v575
    %584 = vmatprep.subr.mxu0 0.0
    %585 = vmatpush1.msra.mxu0 %v576
    %586 = vmatprep.subr.mxu0 0.0
    %587 = vmatpush1.msra.mxu0 %v577
    %588 = vmatprep.subr.mxu0 0.0
    %589 = vmatpush1.msra.mxu0 %v578
    %590 = vmatprep.subr.mxu0 0.0
    %591 = vmatpush1.msra.mxu0 0.0
    %592 = vmatprep.subr.mxu0 0.0
    %593 = vmatpush1.msra.mxu0 0.0
    %594 = vmatprep.subr.mxu0 0.0
    %595 = vmatpush1.msra.mxu0 0.0
    %596 = vmatprep.subr.mxu0 0.0
    %597 = vmatpush1.msra.mxu0 0.0
    %598 = vmatprep.subr.mxu0 0.0
    %599 = vmatpush1.msra.mxu0 0.0
    %600 = vmatprep.subr.mxu0 0.0
    %601 = vmatpush1.msra.mxu0 0.0
    %602 = vmatprep.subr.mxu0 0.0
    %603 = vmatpush1.msra.mxu0 0.0
    %604 = vmatprep.subr.mxu0 0.0
    %605 = vmatpush1.msra.mxu0 0.0
    %606 = vmatprep.subr.mxu0 0.0
    %607 = vmatpush1.msra.mxu0 0.0
    %608 = vmatprep.subr.mxu0 0.0
    %609 = vmatpush1.msra.mxu0 0.0
    %610 = vmatprep.subr.mxu0 0.0
    %611 = vmatpush1.msra.mxu0 0.0
    %612 = vmatprep.subr.mxu0 0.0
    %613 = vmatpush1.msra.mxu0 0.0
    %614 = vmatprep.subr.mxu0 0.0
    %615 = vmatpush1.msra.mxu0 0.0
    %616 = vmatprep.subr.mxu0 0.0
    %617 = vmatpush1.msra.mxu0 0.0
    %618 = vmatprep.subr.mxu0 0.0
    %619 = vmatpush1.msra.mxu0 0.0
    %620 = vmatprep.subr.mxu0 0.0
    %621 = vmatpush1.msra.mxu0 0.0
    %622 = vmatprep.subr.mxu0 0.0
    %623 = vmatpush1.msra.mxu0 0.0
    %624 = vmatprep.subr.mxu0 0.0
    %625 = vmatpush1.msra.mxu0 0.0
    %626 = vmatprep.subr.mxu0 0.0
    %627 = vmatpush1.msra.mxu0 0.0
    %628 = vmatprep.subr.mxu0 0.0
    %629 = vmatpush1.msra.mxu0 0.0
    %630 = vmatprep.subr.mxu0 0.0
    %631 = vmatpush1.msra.mxu0 0.0
    %632 = vmatprep.subr.mxu0 0.0
    %633 = vmatpush1.msra.mxu0 0.0
    %634 = vmatprep.subr.mxu0 0.0
    %635 = vmatpush1.msra.mxu0 0.0
    %636 = vmatprep.subr.mxu0 0.0
    %637 = vmatpush1.msra.mxu0 0.0
    %638 = vmatprep.subr.mxu0 0.0
    %639 = vmatpush1.msra.mxu0 0.0
    %640 = vmatprep.subr.mxu0 0.0
    %641 = vmatpush1.msra.mxu0 0.0
    %642 = vmatprep.subr.mxu0 0.0
    %643 = vmatpush1.msra.mxu0 0.0
    %644 = vmatprep.subr.mxu0 0.0
    %645 = vmatpush1.msra.mxu0 0.0
    %646 = vmatprep.mubr.f32.mxu0 0.0
    %647 = vmatmul.mubr.f32.gmra.mrb[0].mxu0 %v580
    %v648 = vpop.f32.mrb[0].mxu0
    %v649 = vadd.f32 0.0, %v648
    %v650 = vpop.f32.mrb[0].mxu0
    %651 = vdwg.mxu0
    %v652 = vadd.f32 %v567, %v649
    %653 = vset.pattern.permute.xlu0 7
    %654 = vperm.xlu0 %653, %v57
    %v655 = vpop.permute.xlu0 %654
    %vm656 = vcmp.eq.s32.totalorder %v655, %v59
    %v657 = vsel %vm656, 1, 0
    %v658 = vcvt.s32.f32 %v657
    %s659 = scalar_lea.vmem [#allocation5], 224
    %v660 = vld [vmem:[%s659] sm:$0xff]
    %v661 = vld [vmem:[%s659 + $0x8] sm:$0xff]
    %v662 = vld [vmem:[%s659 + $0x10] sm:$0xff]
    %v663 = vld [vmem:[%s659 + $0x18] sm:$0xff]
    %v665 = vsel %vm81, %v658, 0
    %667 = vmatprep.subr.mxu0 0.0
    %668 = vmatpush1.msra.mxu0 %v660
    %669 = vmatprep.subr.mxu0 0.0
    %670 = vmatpush1.msra.mxu0 %v661
    %671 = vmatprep.subr.mxu0 0.0
    %672 = vmatpush1.msra.mxu0 %v662
    %673 = vmatprep.subr.mxu0 0.0
    %674 = vmatpush1.msra.mxu0 %v663
    %675 = vmatprep.subr.mxu0 0.0
    %676 = vmatpush1.msra.mxu0 0.0
    %677 = vmatprep.subr.mxu0 0.0
    %678 = vmatpush1.msra.mxu0 0.0
    %679 = vmatprep.subr.mxu0 0.0
    %680 = vmatpush1.msra.mxu0 0.0
    %681 = vmatprep.subr.mxu0 0.0
    %682 = vmatpush1.msra.mxu0 0.0
    %683 = vmatprep.subr.mxu0 0.0
    %684 = vmatpush1.msra.mxu0 0.0
    %685 = vmatprep.subr.mxu0 0.0
    %686 = vmatpush1.msra.mxu0 0.0
    %687 = vmatprep.subr.mxu0 0.0
    %688 = vmatpush1.msra.mxu0 0.0
    %689 = vmatprep.subr.mxu0 0.0
    %690 = vmatpush1.msra.mxu0 0.0
    %691 = vmatprep.subr.mxu0 0.0
    %692 = vmatpush1.msra.mxu0 0.0
    %693 = vmatprep.subr.mxu0 0.0
    %694 = vmatpush1.msra.mxu0 0.0
    %695 = vmatprep.subr.mxu0 0.0
    %696 = vmatpush1.msra.mxu0 0.0
    %697 = vmatprep.subr.mxu0 0.0
    %698 = vmatpush1.msra.mxu0 0.0
    %699 = vmatprep.subr.mxu0 0.0
    %700 = vmatpush1.msra.mxu0 0.0
    %701 = vmatprep.subr.mxu0 0.0
    %702 = vmatpush1.msra.mxu0 0.0
    %703 = vmatprep.subr.mxu0 0.0
    %704 = vmatpush1.msra.mxu0 0.0
    %705 = vmatprep.subr.mxu0 0.0
    %706 = vmatpush1.msra.mxu0 0.0
    %707 = vmatprep.subr.mxu0 0.0
    %708 = vmatpush1.msra.mxu0 0.0
    %709 = vmatprep.subr.mxu0 0.0
    %710 = vmatpush1.msra.mxu0 0.0
    %711 = vmatprep.subr.mxu0 0.0
    %712 = vmatpush1.msra.mxu0 0.0
    %713 = vmatprep.subr.mxu0 0.0
    %714 = vmatpush1.msra.mxu0 0.0
    %715 = vmatprep.subr.mxu0 0.0
    %716 = vmatpush1.msra.mxu0 0.0
    %717 = vmatprep.subr.mxu0 0.0
    %718 = vmatpush1.msra.mxu0 0.0
    %719 = vmatprep.subr.mxu0 0.0
    %720 = vmatpush1.msra.mxu0 0.0
    %721 = vmatprep.subr.mxu0 0.0
    %722 = vmatpush1.msra.mxu0 0.0
    %723 = vmatprep.subr.mxu0 0.0
    %724 = vmatpush1.msra.mxu0 0.0
    %725 = vmatprep.subr.mxu0 0.0
    %726 = vmatpush1.msra.mxu0 0.0
    %727 = vmatprep.subr.mxu0 0.0
    %728 = vmatpush1.msra.mxu0 0.0
    %729 = vmatprep.subr.mxu0 0.0
    %730 = vmatpush1.msra.mxu0 0.0
    %731 = vmatprep.mubr.f32.mxu0 0.0
    %732 = vmatmul.mubr.f32.gmra.mrb[0].mxu0 %v665
    %v733 = vpop.f32.mrb[0].mxu0
    %v734 = vadd.f32 0.0, %v733
    %v735 = vpop.f32.mrb[0].mxu0
    %736 = vdwg.mxu0
    %v737 = vadd.f32 %v652, %v734
    %v738 = vld [vmem:[%s3] sm:$0x1]
    %v739 = vlaneseq
    %v740 = vshrl.u32 %v739, 7
    %v741 = vsub.s32 0, %v740
    %v742 = vrot.slane %v738, %v741
    %v743 = vadd.f32 %v737, %v742
    %v744 = vmax.f32 %v743, 0.0
    %v745 = vld [vmem:[#allocation7] sm:$0xff]
    %v746 = vld [vmem:[#allocation7 + $0x8] sm:$0xff]
    %v747 = vld [vmem:[#allocation7 + $0x10] sm:$0xff]
    %v748 = vld [vmem:[#allocation7 + $0x18] sm:$0xff]
    %v749 = vld [vmem:[%s3 + $0x1] sm:$0x1]
    %v750 = vlaneseq
    %v751 = vshrl.u32 %v750, 7
    %v752 = vsub.s32 0, %v751
    %v753 = vrot.slane %v749, %v752
    %v755 = vsel %vm81, %v744, 0
    %757 = vmatprep.subr.mxu0 0.0
    %758 = vmatpush1.msra.mxu0 %v745
    %759 = vmatprep.subr.mxu0 0.0
    %760 = vmatpush1.msra.mxu0 %v746
    %761 = vmatprep.subr.mxu0 0.0
    %762 = vmatpush1.msra.mxu0 %v747
    %763 = vmatprep.subr.mxu0 0.0
    %764 = vmatpush1.msra.mxu0 %v748
    %765 = vmatprep.subr.mxu0 0.0
    %766 = vmatpush1.msra.mxu0 0.0
    %767 = vmatprep.subr.mxu0 0.0
    %768 = vmatpush1.msra.mxu0 0.0
    %769 = vmatprep.subr.mxu0 0.0
    %770 = vmatpush1.msra.mxu0 0.0
    %771 = vmatprep.subr.mxu0 0.0
    %772 = vmatpush1.msra.mxu0 0.0
    %773 = vmatprep.subr.mxu0 0.0
    %774 = vmatpush1.msra.mxu0 0.0
    %775 = vmatprep.subr.mxu0 0.0
    %776 = vmatpush1.msra.mxu0 0.0
    %777 = vmatprep.subr.mxu0 0.0
    %778 = vmatpush1.msra.mxu0 0.0
    %779 = vmatprep.subr.mxu0 0.0
    %780 = vmatpush1.msra.mxu0 0.0
    %781 = vmatprep.subr.mxu0 0.0
    %782 = vmatpush1.msra.mxu0 0.0
    %783 = vmatprep.subr.mxu0 0.0
    %784 = vmatpush1.msra.mxu0 0.0
    %785 = vmatprep.subr.mxu0 0.0
    %786 = vmatpush1.msra.mxu0 0.0
    %787 = vmatprep.subr.mxu0 0.0
    %788 = vmatpush1.msra.mxu0 0.0
    %789 = vmatprep.subr.mxu0 0.0
    %790 = vmatpush1.msra.mxu0 0.0
    %791 = vmatprep.subr.mxu0 0.0
    %792 = vmatpush1.msra.mxu0 0.0
    %793 = vmatprep.subr.mxu0 0.0
    %794 = vmatpush1.msra.mxu0 0.0
    %795 = vmatprep.subr.mxu0 0.0
    %796 = vmatpush1.msra.mxu0 0.0
    %797 = vmatprep.subr.mxu0 0.0
    %798 = vmatpush1.msra.mxu0 0.0
    %799 = vmatprep.subr.mxu0 0.0
    %800 = vmatpush1.msra.mxu0 0.0
    %801 = vmatprep.subr.mxu0 0.0
    %802 = vmatpush1.msra.mxu0 0.0
    %803 = vmatprep.subr.mxu0 0.0
    %804 = vmatpush1.msra.mxu0 0.0
    %805 = vmatprep.subr.mxu0 0.0
    %806 = vmatpush1.msra.mxu0 0.0
    %807 = vmatprep.subr.mxu0 0.0
    %808 = vmatpush1.msra.mxu0 0.0
    %809 = vmatprep.subr.mxu0 0.0
    %810 = vmatpush1.msra.mxu0 0.0
    %811 = vmatprep.subr.mxu0 0.0
    %812 = vmatpush1.msra.mxu0 0.0
    %813 = vmatprep.subr.mxu0 0.0
    %814 = vmatpush1.msra.mxu0 0.0
    %815 = vmatprep.subr.mxu0 0.0
    %816 = vmatpush1.msra.mxu0 0.0
    %817 = vmatprep.subr.mxu0 0.0
    %818 = vmatpush1.msra.mxu0 0.0
    %819 = vmatprep.subr.mxu0 0.0
    %820 = vmatpush1.msra.mxu0 0.0
    %821 = vmatprep.mubr.f32.mxu0 0.0
    %822 = vmatmul.mubr.f32.gmra.mrb[0].mxu0 %v755
    %v823 = vpop.f32.mrb[0].mxu0
    %v824 = vadd.f32 %v753, %v823
    %v825 = vpop.f32.mrb[0].mxu0
    %826 = vdwg.mxu0
    %v827 = vmax.f32 %v824, 0.0
    %vm828 = vcmask 254976
    %829 = vst.msk [vmem:[#allocation8] sm:$0x3] %vm828, %v827
    // Predicated region
    $region30: #{tpu_custom_call.1} parent=1 // pred_check
      _
    $region31: #{tpu_custom_call.1} parent=1 // pred_check_branch
      %831 = sbr.rel (0) target = $region33
    $region32: #{tpu_custom_call.1} parent=1 // pred_region
      %s833 = ssub.s32 32, 32
      %834 = vsyncadd [#allocation4], %s833
      %s836 = sshll.u32 [#allocation8], 4
      %s837 = int_to_ptr.vmem [resolvable:$true] %s836
      %839 = dma.vmem_to_hbm [thread:$0]  %s837, 32, %s4, [#allocation4]
    $region33: #{tpu_custom_call.1} parent=1 // pred_fallthru
      _
    // Predicated region
    $region34: #{tpu_custom_call.1} parent=1 // pred_check
      _
    $region35: #{tpu_custom_call.1} parent=1 // pred_check_branch
      %841 = sbr.rel (0) target = $region37
    $region36: #{tpu_custom_call.1} parent=1 // pred_region
      %842 = dma.done [#allocation4], 32
    $region37: #{tpu_custom_call.1} parent=1 // pred_fallthru
      _
    %843 = vsyncpa [#allocation3], 1
    %844 = vsyncpa [#allocation6], 1
    %845 = vsyncpa [#allocation4], 1

</llo_original>
